<compile_context>
chip_gen: v6e
topology: v6e:2x2x1
jax: 0.10.0
libtpu: 0.0.40
codegen_flags: <defaults>
</compile_context>

<pallas_src>
import functools
import math

import jax
import jax.numpy as jnp
from jax import lax
from jax.experimental import pallas as pl
from jax.experimental.pallas import tpu as pltpu

# ---------------------------------------------------------------------------
# Problem sizes (small, but respecting the hard-coded dims in __init__:
# embed_dim=200, hidden_dim=768).
# ---------------------------------------------------------------------------
B = 2            # batch
S = 8            # sequence length
H = 768          # hidden_dim (hard-coded in the module)
E = 200          # embed_dim  (hard-coded in the module)
C = 128          # class_num  (lane-dense: exactly one 128-wide column tile)
VOCAB = 1000     # vocab_size
FFN = 256        # stand-in encoder FFN width


# ---------------------------------------------------------------------------
# Pallas kernel: fused  (folded fc∘embedding matmul)  ->  mask2
#   h_ref  : (TB, S, H) f32   encoder hidden states (CLS row sliced in-kernel)
#   x_ref  : (TB, S)    i32   token ids (VMEM, vectorized mask construction)
#   wh_ref : (H, C)     bf16  folded head weight  = (embedding[:C] @ fc_w).T
#   bh_ref : (1, C)     f32   folded head bias    =  embedding[:C] @ fc_b
#   score_ref : (TB, C) f32
# ---------------------------------------------------------------------------
def _head_kernel(h_ref, x_ref, wh_ref, bh_ref, score_ref):
    tb, s, _ = h_ref.shape
    c = score_ref.shape[-1]

    # CLS hidden state, cast to bf16 for the MXU (accumulate in f32).
    h_cls = h_ref[...][:, 0, :].astype(jnp.bfloat16)                  # (TB, H)

    # Single MXU pass: raw score = h_cls @ W_head + b_head            (TB, C) f32
    raw = jnp.dot(h_cls, wh_ref[...],
                  preferred_element_type=jnp.float32) + bh_ref[...]

    # mask2 semantics of the PyTorch loop:
    #   mask2[i][x[i] * mask1[i]] = 0   with mask1 = (x < class_num)
    # i.e. for every token j of row b, class (x[b,j] if x[b,j] < C else 0)
    # is suppressed with -1e6.  Vectorized: one compare over a (TB, S, C) tile
    # (the trailing (S=8, C=128) dims are exactly one (8,128) vreg per row)
    # followed by a sublane reduce -- no per-token scalar chain.
    x = x_ref[...]                                                     # (TB, S) i32
    iv = x * (x < c).astype(jnp.int32)                                 # == x * mask1
    classes = lax.broadcasted_iota(jnp.int32, (tb, s, c), 2)
    hit_cnt = jnp.sum((iv[:, :, None] == classes).astype(jnp.int32), axis=1)
    hit = hit_cnt > 0                                                  # (TB, C) bool

    # score = raw * mask2 + (-1e6) * (1 - mask2)  ==  where(hit, -1e6, raw)
    score_ref[...] = jnp.where(hit, -1000000.0, raw)


def head_pallas(h, x, head_w, head_b, *, tb=None):
    """h:(B,S,H) f32, x:(B,S) i32, head_w:(H,C) bf16, head_b:(1,C) f32 -> (B,C) f32.

    Scaling notes (perf review, only binding once B grows):
      * batch is the single grid axis, marked "parallel" so v7x's 2 TensorCores
        shard it once B is tiled; v5e/v6e (1 TC) are unaffected.
      * head_w / head_b index_maps return (0, 0): 192 KiB of weights stay VMEM
        resident, zero re-DMA per batch tile.
      * at scale pick tb as a large multiple of 8 (unmasked f32 vst) and 16
        (bf16 sublane packing), budgeting double-buffered inputs + (tb, C) f32
        output against v7x's 64 MiB physical / 32 MiB default scoped VMEM.
        Streaming the full (tb, S, H) f32 slab stops making sense there --
        switch the S axis to a single CLS row (pl.Squeezed / pl.Element) or
        slice in the wrapper.
      * x stays a blocked (tb, S) int32 VMEM input; do NOT scalar-prefetch it
        into SMEM at scale (pads to next_pow2(4N) bytes -> SMEM ceiling).
    """
    bn, sn, hn = h.shape
    _, cn = head_w.shape
    tb = bn if tb is None else tb
    assert bn % tb == 0, "batch must be divisible by the row tile"
    nb = bn // tb

    return pl.pallas_call(
        _head_kernel,
        grid=(nb,),
        in_specs=[
            pl.BlockSpec((tb, sn, hn), lambda i: (i, 0, 0)),   # h      (f32)
            pl.BlockSpec((tb, sn), lambda i: (i, 0)),          # x ids  (i32)
            pl.BlockSpec((hn, cn), lambda i: (0, 0)),          # head_w (bf16, resident)
            pl.BlockSpec((1, cn), lambda i: (0, 0)),           # head_b (f32,  resident)
        ],
        out_specs=pl.BlockSpec((tb, cn), lambda i: (i, 0)),    # score
        out_shape=jax.ShapeDtypeStruct((bn, cn), jnp.float32),
        compiler_params=pltpu.CompilerParams(
            dimension_semantics=("parallel",)),
    )(h, x, head_w, head_b)


# ---------------------------------------------------------------------------
# Deterministic parameter init (synthetic; no checkpoint loading)
# ---------------------------------------------------------------------------
def init_params(key):
    ks = jax.random.split(key, 12)
    scale = 0.02
    params = {
        # nn.Embedding(vocab, 200, padding_idx=0) -- row 0 zeroed.
        # TODO(synk): max_norm is a lookup-time renorm side effect in PyTorch;
        # .weight.data is used raw here.
        "embedding": jax.random.normal(ks[0], (VOCAB, E), jnp.float32).at[0].set(0.0),
        # nn.Linear(768, 200): weight is (E, H), bias (E,)
        "fc_w": scale * jax.random.normal(ks[1], (E, H), jnp.float32),
        "fc_b": scale * jax.random.normal(ks[2], (E,), jnp.float32),
        # stand-in encoder params
        "tok_emb": scale * jax.random.normal(ks[3], (VOCAB, H), jnp.float32),
        "pos_emb": scale * jax.random.normal(ks[4], (S, H), jnp.float32),
        "wq": scale * jax.random.normal(ks[5], (H, H), jnp.float32),
        "wk": scale * jax.random.normal(ks[6], (H, H), jnp.float32),
        "wv": scale * jax.random.normal(ks[7], (H, H), jnp.float32),
        "wo": scale * jax.random.normal(ks[8], (H, H), jnp.float32),
        "w1": scale * jax.random.normal(ks[9], (H, FFN), jnp.float32),
        "w2": scale * jax.random.normal(ks[10], (FFN, H), jnp.float32),
    }
    return params


def fold_head_params(params):
    """Fold fc (768->200) and embedding[:class_num] (200->128) into a single
    (768, 128) head weight + (1, 128) bias.  Done ONCE outside the per-step
    forward (the module's weights are static: embedding.requires_grad=False).
    The fold itself stays in f32; only the final head_w is cast to bf16
    (keep it f32 if closer parity with the PyTorch f32 reference is needed).
      vd @ emb[:C].T = h @ (emb[:C] @ fc_w).T + emb[:C] @ fc_b
    """
    emb_c = params["embedding"][:C]                        # (C, E)
    head_w = (emb_c @ params["fc_w"]).T                    # (H, C)  f32 fold
    head_b = (emb_c @ params["fc_b"]).reshape(1, C)        # (1, C)
    return head_w.astype(jnp.bfloat16), head_b.astype(jnp.float32)


# TODO(synk): the original `encoder` is an external module (e.g. BERT) not
# defined in model_bertOnly.py; this is a deterministic single-layer stand-in.
def standin_encoder(x, attention_mask, p):
    h = p["tok_emb"][x] + p["pos_emb"][None, :, :]                # (B, S, H)
    q = h @ p["wq"]
    k = h @ p["wk"]
    v = h @ p["wv"]
    att = jnp.einsum("bqd,bkd->bqk", q, k) / math.sqrt(H)         # (B, S, S)
    bias = (1.0 - attention_mask.astype(jnp.float32))[:, None, :] * (-1e9)
    probs = jax.nn.softmax(att + bias, axis=-1)
    h = h + jnp.einsum("bqk,bkd->bqd", probs, v) @ p["wo"]
    h = h + jax.nn.relu(h @ p["w1"]) @ p["w2"]
    return h                                                      # (B, S, H)


def cross_entropy_mean(score, labels):
    """torch.nn.CrossEntropyLoss (reduction='mean') on the masked score.
    Computed in the wrapper (per review): XLA fuses this tiny (B, C) softmax
    for free, and it keeps label handling / scalar outputs out of the kernel."""
    m = jnp.max(score, axis=1, keepdims=True)                      # (B, 1)
    lse = m[:, 0] + jnp.log(jnp.sum(jnp.exp(score - m), axis=1))   # (B,)
    picked = jnp.take_along_axis(score, labels[:, None].astype(jnp.int32),
                                 axis=1)[:, 0]                     # (B,)
    # NOTE: if a token id equals the label, that logit is masked to -1e6 and
    # the loss becomes ~1e6 -- this matches the PyTorch semantics.
    return jnp.mean(lse - picked)


# ---------------------------------------------------------------------------
# Full forward, mirroring Encoder.forward
# ---------------------------------------------------------------------------
@functools.partial(jax.jit, static_argnames=("operation",))
def encoder_forward(params, head_w, head_b, x, w, operation="train"):
    attention_mask = (x > 0).astype(jnp.int32)             # torch.gt(x, 0)
    h = standin_encoder(x, attention_mask, params)          # encoder(x, mask)[0]
    # TODO(synk): embedding_dropout Dropout(0.2) treated as identity
    # (eval / deterministic mode), even when operation == 'train'.

    # Fused head: CLS slice + bf16 cast + folded matmul + mask2, one Pallas call.
    score = head_pallas(h, x.astype(jnp.int32), head_w, head_b)   # (B, C) f32

    # torch.sort(score, descending=True) -> indices
    # TODO(synk): sorting has no clean Pallas TPU equivalent; done in plain JAX.
    indices = jnp.argsort(-score, axis=1)

    if operation == "train":
        loss = cross_entropy_mean(score, w)
        return loss, score, indices
    return indices


# ---------------------------------------------------------------------------
# Pure-JAX reference of the head (two f32 GEMMs, unfolded) for a parity check.
# ---------------------------------------------------------------------------
def score_reference(params, h, x):
    h1 = h[:, 0, :]                                         # (B, H)
    vd = h1 @ params["fc_w"].T + params["fc_b"]             # (B, E)
    raw = vd @ params["embedding"][:C].T                    # (B, C)
    iv = x * (x < C).astype(jnp.int32)                      # (B, S)
    hit = jnp.any(iv[:, :, None] == jnp.arange(C)[None, None, :], axis=1)
    return jnp.where(hit, -1000000.0, raw)


# ---------------------------------------------------------------------------
if __name__ == "__main__":
    key = jax.random.PRNGKey(0)
    kp, kx, kw = jax.random.split(key, 3)

    params = init_params(kp)
    head_w, head_b = fold_head_params(params)               # folded once, static

    # token ids with some padding zeros at the tail of each sequence
    x = jax.random.randint(kx, (B, S), 1, VOCAB, dtype=jnp.int32)
    x = x.at[:, -2:].set(0)
    # labels in [1, class_num)
    w = jax.random.randint(kw, (B,), 1, C, dtype=jnp.int32)

    # Correctness check of the Pallas head vs. an unfolded f32 reference
    # (bf16 folded weights => loose tolerance).
    attention_mask = (x > 0).astype(jnp.int32)
    h = standin_encoder(x, attention_mask, params)
    score_p = head_pallas(h, x, head_w, head_b)
    score_r = score_reference(params, h, x)
    jax.block_until_ready((score_p, score_r))
    assert float(jnp.max(jnp.abs(score_p - score_r))) < 2e-2, "head mismatch"

    loss, score, indices = encoder_forward(params, head_w, head_b, x, w,
                                           operation="train")
    jax.block_until_ready((loss, score, indices))

    test_indices = encoder_forward(params, head_w, head_b, x, w,
                                   operation="test")
    jax.block_until_ready(test_indices)

    assert score.shape == (B, C) and indices.shape == (B, C)
    assert bool(jnp.isfinite(loss))
    print("KERNEL_OK")
</pallas_src>

<mosaic_0001>
module attributes {stable_mosaic.version = 11 : i64} {
  func.func @_head_kernel(%arg0: i32, %arg1: memref<2x8x768xf32, #tpu.memory_space<vmem>>, %arg2: memref<2x8xi32, #tpu.memory_space<vmem>>, %arg3: memref<768x128xbf16, #tpu.memory_space<vmem>>, %arg4: memref<1x128xf32, #tpu.memory_space<vmem>>, %arg5: memref<2x128xf32, #tpu.memory_space<vmem>>) attributes {dimension_semantics = [#tpu.dimension_semantics<parallel>], iteration_bounds = array<i64: 1>, scalar_prefetch = 0 : i64, scratch_operands = 0 : i64, tpu.core_type = #tpu.core_type<tc>, window_params = [{transform_indices = @transform_0, window_bounds = array<i64: 2, 8, 768>}, {transform_indices = @transform_1, window_bounds = array<i64: 2, 8>}, {pipeline_mode = #tpu.pipeline_mode<synchronous>, transform_indices = @transform_2, window_bounds = array<i64: 768, 128>}, {pipeline_mode = #tpu.pipeline_mode<synchronous>, transform_indices = @transform_3, window_bounds = array<i64: 1, 128>}, {transform_indices = @transform_4, window_bounds = array<i64: 2, 128>}]} {
    %c0 = arith.constant 0 : index
    %c0_0 = arith.constant 0 : index
    %c0_1 = arith.constant 0 : index
    %0 = vector.load %arg1[%c0, %c0_0, %c0_1] : memref<2x8x768xf32, #tpu.memory_space<vmem>>, vector<2x8x768xf32>
    %1 = vector.extract_strided_slice %0 {offsets = [0, 0, 0], sizes = [2, 1, 768], strides = [1, 1, 1]} : vector<2x8x768xf32> to vector<2x1x768xf32>
    %2 = vector.shape_cast %1 : vector<2x1x768xf32> to vector<2x768xf32>
    %3 = arith.truncf %2 : vector<2x768xf32> to vector<2x768xbf16>
    %c0_2 = arith.constant 0 : index
    %c0_3 = arith.constant 0 : index
    %4 = vector.load %arg3[%c0_2, %c0_3] : memref<768x128xbf16, #tpu.memory_space<vmem>>, vector<768x128xbf16>
    %cst = arith.constant dense<0.000000e+00> : vector<2x128xf32>
    %5 = tpu.matmul %3, %4, %cst {dimension_numbers = #tpu.dot_dimension_numbers<[1], [0], [0], [1], [0, 0, 1, 1], [], []>} : vector<2x768xbf16>, vector<768x128xbf16>, vector<2x128xf32> -> vector<2x128xf32>
    %c0_4 = arith.constant 0 : index
    %c0_5 = arith.constant 0 : index
    %6 = vector.load %arg4[%c0_4, %c0_5] : memref<1x128xf32, #tpu.memory_space<vmem>>, vector<1x128xf32>
    %7 = vector.broadcast %6 : vector<1x128xf32> to vector<2x128xf32>
    %8 = arith.addf %5, %7 : vector<2x128xf32>
    %c0_6 = arith.constant 0 : index
    %c0_7 = arith.constant 0 : index
    %9 = vector.load %arg2[%c0_6, %c0_7] : memref<2x8xi32, #tpu.memory_space<vmem>>, vector<2x8xi32>
    %c128_i32 = arith.constant 128 : i32
    %10 = vector.broadcast %c128_i32 : i32 to vector<2x8xi32>
    %11 = arith.cmpi slt, %9, %10 : vector<2x8xi32>
    %12 = arith.extui %11 : vector<2x8xi1> to vector<2x8xi32>
    %13 = arith.muli %9, %12 : vector<2x8xi32>
    %14 = tpu.iota {dimensions = array<i32: 2>} : vector<2x8x128xi32>
    %15 = vector.shape_cast %13 : vector<2x8xi32> to vector<2x8x1xi32>
    %16 = vector.broadcast %15 : vector<2x8x1xi32> to vector<2x8x128xi32>
    %17 = arith.cmpi eq, %16, %14 : vector<2x8x128xi32>
    %18 = arith.extui %17 : vector<2x8x128xi1> to vector<2x8x128xi32>
    %cst_8 = arith.constant dense<0> : vector<2x128xi32>
    %19 = vector.multi_reduction <add>, %18, %cst_8 [1] : vector<2x8x128xi32> to vector<2x128xi32>
    %c0_i32 = arith.constant 0 : i32
    %20 = vector.broadcast %c0_i32 : i32 to vector<2x128xi32>
    %21 = arith.cmpi sgt, %19, %20 : vector<2x128xi32>
    %cst_9 = arith.constant -1.000000e+06 : f32
    %22 = vector.broadcast %cst_9 : f32 to vector<2x128xf32>
    %23 = arith.select %21, %22, %8 : vector<2x128xi1>, vector<2x128xf32>
    %c0_10 = arith.constant 0 : index
    %c0_11 = arith.constant 0 : index
    %24 = vector.load %arg5[%c0_10, %c0_11] : memref<2x128xf32, #tpu.memory_space<vmem>>, vector<2x128xf32>
    tpu.vector_store %arg5[%c0_10, %c0_11], %23 {strides = array<i32>} : memref<2x128xf32, #tpu.memory_space<vmem>>, vector<2x128xf32>,
    return
  }
  func.func @transform_0(%arg0: i32) -> (i32, i32, i32) {
    %c0_i32 = arith.constant 0 : i32
    %c0_i32_0 = arith.constant 0 : i32
    %c0_i32_1 = arith.constant 0 : i32
    return %arg0, %c0_i32, %c0_i32_0 : i32, i32, i32
  }
  func.func @transform_1(%arg0: i32) -> (i32, i32) {
    %c0_i32 = arith.constant 0 : i32
    %c0_i32_0 = arith.constant 0 : i32
    return %arg0, %c0_i32 : i32, i32
  }
  func.func @transform_2(%arg0: i32) -> (i32, i32) {
    %c0_i32 = arith.constant 0 : i32
    %c0_i32_0 = arith.constant 0 : i32
    %c0_i32_1 = arith.constant 0 : i32
    return %c0_i32, %c0_i32_0 : i32, i32
  }
  func.func @transform_3(%arg0: i32) -> (i32, i32) {
    %c0_i32 = arith.constant 0 : i32
    %c0_i32_0 = arith.constant 0 : i32
    %c0_i32_1 = arith.constant 0 : i32
    return %c0_i32, %c0_i32_0 : i32, i32
  }
  func.func @transform_4(%arg0: i32) -> (i32, i32) {
    %c0_i32 = arith.constant 0 : i32
    %c0_i32_0 = arith.constant 0 : i32
    return %arg0, %c0_i32 : i32, i32
  }
}

</mosaic_0001>

<llo_original>
// kernel: tpu_custom_call.1
$region0: #{tpu_custom_call.1}
  #allocation0 [shape = 'u32[]', space=smem, size = 0x4, offset = 0x4, fixed_abs, tag = 'smem constant byte address 0x4 - core index']
  #allocation1 [shape = 'u32[144,128]{1,0:T(1,128)}', space=vmem, size = 0x12000, scoped, tag = 'internal scratch']
  %s0 = inlined_call_operand.hbm [shape: f32[2,8,768], index: 0, kind: input, shape index: {}]
  %s1 = inlined_call_operand.hbm [shape: s32[2,8], index: 1, kind: input, shape index: {}]
  %s2 = inlined_call_operand.hbm [shape: bf16[768,128], index: 2, kind: input, shape index: {}]
  %s3 = inlined_call_operand.vmem [shape: f32[1,128], index: 3, kind: input, shape index: {}]
  %s4 = inlined_call_operand.hbm [shape: f32[2,128], index: 4, kind: output, shape index: {}]
  %s5 = sld [smem:[#allocation0]]
  $region38: #{tpu_custom_call.1} parent=0
    _
  %s7 = ssub.s32 1, %s5
  %s8 = scalar_select 0, %s7, %s5
  $region1: #{tpu_custom_call.1} parent=0
    #allocation2 [shape = 'u8[49152]{0}', space=vmem, size = 0xc000, scoped, tag = 'input window, operand 0, single buffered']
    #allocation3 [shape = 's32[1]{0}', space=sflag, size = 0x4, scoped, tag = 'scoped memory for tpu_custom_call.1']
    #allocation4 [shape = 's32[1]{0}', space=sflag, size = 0x4, scoped, tag = 'scoped memory for tpu_custom_call.1']
    #allocation5 [shape = 'u8[1024]{0}', space=vmem, size = 0x400, scoped, tag = 'input window, operand 1, single buffered']
    #allocation6 [shape = 's32[1]{0}', space=sflag, size = 0x4, scoped, tag = 'scoped memory for tpu_custom_call.1']
    #allocation7 [shape = 'u8[196608]{0}', space=vmem, size = 0x30000, scoped, tag = 'input window, operand 2, single buffered']
    #allocation8 [shape = 'u8[1024]{0}', space=vmem, size = 0x400, scoped, tag = 'output window, operand 0, single buffered']
    %9 = vsyncpa [#allocation3], 0
    %10 = vsyncpa [#allocation6], 0
    %11 = vsyncpa [#allocation4], 0
    // Predicated region
    $region2: #{tpu_custom_call.1} parent=1 // pred_check
      _
    $region3: #{tpu_custom_call.1} parent=1 // pred_check_branch
      %13 = sbr.rel (0) target = $region5
    $region4: #{tpu_custom_call.1} parent=1 // pred_region
      %s15 = ssub.s32 1536, 1536
      %16 = vsyncadd [#allocation3], %s15
      %s17 = sshll.u32 [#allocation2], 4
      %s18 = int_to_ptr.vmem [resolvable:$true] %s17
      %23 = dma.hbm_to_vmem [thread:$0]  %s0, 1536, %s18, [#allocation3], 768, 768, 48
    $region5: #{tpu_custom_call.1} parent=1 // pred_fallthru
      _
    // Predicated region
    $region6: #{tpu_custom_call.1} parent=1 // pred_check
      _
    $region7: #{tpu_custom_call.1} parent=1 // pred_check_branch
      %25 = sbr.rel (0) target = $region9
    $region8: #{tpu_custom_call.1} parent=1 // pred_region
      %s27 = ssub.s32 32, 32
      %28 = vsyncadd [#allocation6], %s27
      %s30 = sshll.u32 [#allocation5], 4
      %s31 = int_to_ptr.vmem [resolvable:$true] %s30
      %33 = dma.hbm_to_vmem [thread:$0]  %s1, 32, %s31, [#allocation6]
    $region9: #{tpu_custom_call.1} parent=1 // pred_fallthru
      _
    // Predicated region
    $region10: #{tpu_custom_call.1} parent=1 // pred_check
      _
    $region11: #{tpu_custom_call.1} parent=1 // pred_check_branch
      %35 = sbr.rel (0) target = $region13
    $region12: #{tpu_custom_call.1} parent=1 // pred_region
      %s37 = ssub.s32 6144, 6144
      %38 = vsyncadd [#allocation6], %s37
      %s39 = sshll.u32 [#allocation7], 4
      %s40 = int_to_ptr.vmem [resolvable:$true] %s39
      %45 = dma.hbm_to_vmem [thread:$0]  %s2, 6144, %s40, [#allocation6], 64, 64, 4
    $region13: #{tpu_custom_call.1} parent=1 // pred_fallthru
      _
    // Predicated region
    $region14: #{tpu_custom_call.1} parent=1 // pred_check
      _
    $region15: #{tpu_custom_call.1} parent=1 // pred_check_branch
      %47 = sbr.rel (0) target = $region17
    $region16: #{tpu_custom_call.1} parent=1 // pred_region
      _
    $region17: #{tpu_custom_call.1} parent=1 // pred_fallthru
      _
    // Predicated region
    $region18: #{tpu_custom_call.1} parent=1 // pred_check
      _
    $region19: #{tpu_custom_call.1} parent=1 // pred_check_branch
      %49 = sbr.rel (0) target = $region21
    $region20: #{tpu_custom_call.1} parent=1 // pred_region
      %50 = dma.done [#allocation3], 1536
    $region21: #{tpu_custom_call.1} parent=1 // pred_fallthru
      _
    // Predicated region
    $region22: #{tpu_custom_call.1} parent=1 // pred_check
      _
    $region23: #{tpu_custom_call.1} parent=1 // pred_check_branch
      %52 = sbr.rel (0) target = $region25
    $region24: #{tpu_custom_call.1} parent=1 // pred_region
      %53 = dma.done [#allocation6], 32
    $region25: #{tpu_custom_call.1} parent=1 // pred_fallthru
      _
    // Predicated region
    $region26: #{tpu_custom_call.1} parent=1 // pred_check
      _
    $region27: #{tpu_custom_call.1} parent=1 // pred_check_branch
      %55 = sbr.rel (0) target = $region29
    $region28: #{tpu_custom_call.1} parent=1 // pred_region
      %56 = dma.done [#allocation6], 6144
    $region29: #{tpu_custom_call.1} parent=1 // pred_fallthru
      _
    %v58 = vld [vmem:[#allocation2] sm:$0xff]
    %v59 = vld [vmem:[#allocation2 + $0x8] sm:$0xff]
    %v60 = vld [vmem:[#allocation2 + $0x10] sm:$0xff]
    %v61 = vld [vmem:[#allocation2 + $0x18] sm:$0xff]
    %v62 = vld [vmem:[#allocation2 + $0x20] sm:$0xff]
    %v63 = vld [vmem:[#allocation2 + $0x28] sm:$0xff]
    %v64 = vld [vmem:[#allocation2 + $0x30] sm:$0xff]
    %v65 = vld [vmem:[#allocation2 + $0x38] sm:$0xff]
    %v66 = vld [vmem:[#allocation2 + $0x40] sm:$0xff]
    %v67 = vld [vmem:[#allocation2 + $0x48] sm:$0xff]
    %v68 = vld [vmem:[#allocation2 + $0x50] sm:$0xff]
    %v69 = vld [vmem:[#allocation2 + $0x58] sm:$0xff]
    %v70 = vpack.c.bf16 %v58, %v58
    %v71 = vpack.c.bf16 %v59, %v59
    %v72 = vpack.c.bf16 %v60, %v60
    %v73 = vpack.c.bf16 %v61, %v61
    %v74 = vpack.c.bf16 %v62, %v62
    %v75 = vpack.c.bf16 %v63, %v63
    %v76 = vpack.c.bf16 %v64, %v64
    %v77 = vpack.c.bf16 %v65, %v65
    %v78 = vpack.c.bf16 %v66, %v66
    %v79 = vpack.c.bf16 %v67, %v67
    %v80 = vpack.c.bf16 %v68, %v68
    %v81 = vpack.c.bf16 %v69, %v69
    %v82 = vld [vmem:[#allocation7] sm:$0xf]
    %v83 = vld [vmem:[#allocation7 + $0x4] sm:$0xf]
    %v84 = vld [vmem:[#allocation7 + $0x8] sm:$0xf]
    %v85 = vld [vmem:[#allocation7 + $0xc] sm:$0xf]
    %v86 = vld [vmem:[#allocation7 + $0x10] sm:$0xf]
    %v87 = vld [vmem:[#allocation7 + $0x14] sm:$0xf]
    %v88 = vld [vmem:[#allocation7 + $0x18] sm:$0xf]
    %v89 = vld [vmem:[#allocation7 + $0x1c] sm:$0xf]
    %v90 = vld [vmem:[#allocation7 + $0x20] sm:$0xf]
    %v91 = vld [vmem:[#allocation7 + $0x24] sm:$0xf]
    %v92 = vld [vmem:[#allocation7 + $0x28] sm:$0xf]
    %v93 = vld [vmem:[#allocation7 + $0x2c] sm:$0xf]
    %v94 = vld [vmem:[#allocation7 + $0x30] sm:$0xf]
    %v95 = vld [vmem:[#allocation7 + $0x34] sm:$0xf]
    %v96 = vld [vmem:[#allocation7 + $0x38] sm:$0xf]
    %v97 = vld [vmem:[#allocation7 + $0x3c] sm:$0xf]
    %v98 = vld [vmem:[#allocation7 + $0x40] sm:$0xf]
    %v99 = vld [vmem:[#allocation7 + $0x44] sm:$0xf]
    %v100 = vld [vmem:[#allocation7 + $0x48] sm:$0xf]
    %v101 = vld [vmem:[#allocation7 + $0x4c] sm:$0xf]
    %v102 = vld [vmem:[#allocation7 + $0x50] sm:$0xf]
    %v103 = vld [vmem:[#allocation7 + $0x54] sm:$0xf]
    %v104 = vld [vmem:[#allocation7 + $0x58] sm:$0xf]
    %v105 = vld [vmem:[#allocation7 + $0x5c] sm:$0xf]
    %v106 = vld [vmem:[#allocation7 + $0x60] sm:$0xf]
    %v107 = vld [vmem:[#allocation7 + $0x64] sm:$0xf]
    %v108 = vld [vmem:[#allocation7 + $0x68] sm:$0xf]
    %v109 = vld [vmem:[#allocation7 + $0x6c] sm:$0xf]
    %v110 = vld [vmem:[#allocation7 + $0x70] sm:$0xf]
    %v111 = vld [vmem:[#allocation7 + $0x74] sm:$0xf]
    %v112 = vld [vmem:[#allocation7 + $0x78] sm:$0xf]
    %v113 = vld [vmem:[#allocation7 + $0x7c] sm:$0xf]
    %v114 = vld [vmem:[#allocation7 + $0x80] sm:$0xf]
    %v115 = vld [vmem:[#allocation7 + $0x84] sm:$0xf]
    %v116 = vld [vmem:[#allocation7 + $0x88] sm:$0xf]
    %v117 = vld [vmem:[#allocation7 + $0x8c] sm:$0xf]
    %v118 = vld [vmem:[#allocation7 + $0x90] sm:$0xf]
    %v119 = vld [vmem:[#allocation7 + $0x94] sm:$0xf]
    %v120 = vld [vmem:[#allocation7 + $0x98] sm:$0xf]
    %v121 = vld [vmem:[#allocation7 + $0x9c] sm:$0xf]
    %v122 = vld [vmem:[#allocation7 + $0xa0] sm:$0xf]
    %v123 = vld [vmem:[#allocation7 + $0xa4] sm:$0xf]
    %v124 = vld [vmem:[#allocation7 + $0xa8] sm:$0xf]
    %v125 = vld [vmem:[#allocation7 + $0xac] sm:$0xf]
    %v126 = vld [vmem:[#allocation7 + $0xb0] sm:$0xf]
    %v127 = vld [vmem:[#allocation7 + $0xb4] sm:$0xf]
    %v128 = vld [vmem:[#allocation7 + $0xb8] sm:$0xf]
    %v129 = vld [vmem:[#allocation7 + $0xbc] sm:$0xf]
    %v130 = vld [vmem:[#allocation7 + $0xc0] sm:$0xf]
    %v131 = vld [vmem:[#allocation7 + $0xc4] sm:$0xf]
    %v132 = vld [vmem:[#allocation7 + $0xc8] sm:$0xf]
    %v133 = vld [vmem:[#allocation7 + $0xcc] sm:$0xf]
    %v134 = vld [vmem:[#allocation7 + $0xd0] sm:$0xf]
    %v135 = vld [vmem:[#allocation7 + $0xd4] sm:$0xf]
    %v136 = vld [vmem:[#allocation7 + $0xd8] sm:$0xf]
    %v137 = vld [vmem:[#allocation7 + $0xdc] sm:$0xf]
    %v138 = vld [vmem:[#allocation7 + $0xe0] sm:$0xf]
    %v139 = vld [vmem:[#allocation7 + $0xe4] sm:$0xf]
    %v140 = vld [vmem:[#allocation7 + $0xe8] sm:$0xf]
    %v141 = vld [vmem:[#allocation7 + $0xec] sm:$0xf]
    %v142 = vld [vmem:[#allocation7 + $0xf0] sm:$0xf]
    %v143 = vld [vmem:[#allocation7 + $0xf4] sm:$0xf]
    %v144 = vld [vmem:[#allocation7 + $0xf8] sm:$0xf]
    %v145 = vld [vmem:[#allocation7 + $0xfc] sm:$0xf]
    %v146 = vld [vmem:[#allocation7 + $0x100] sm:$0xf]
    %v147 = vld [vmem:[#allocation7 + $0x104] sm:$0xf]
    %v148 = vld [vmem:[#allocation7 + $0x108] sm:$0xf]
    %v149 = vld [vmem:[#allocation7 + $0x10c] sm:$0xf]
    %v150 = vld [vmem:[#allocation7 + $0x110] sm:$0xf]
    %v151 = vld [vmem:[#allocation7 + $0x114] sm:$0xf]
    %v152 = vld [vmem:[#allocation7 + $0x118] sm:$0xf]
    %v153 = vld [vmem:[#allocation7 + $0x11c] sm:$0xf]
    %v154 = vld [vmem:[#allocation7 + $0x120] sm:$0xf]
    %v155 = vld [vmem:[#allocation7 + $0x124] sm:$0xf]
    %v156 = vld [vmem:[#allocation7 + $0x128] sm:$0xf]
    %v157 = vld [vmem:[#allocation7 + $0x12c] sm:$0xf]
    %v158 = vld [vmem:[#allocation7 + $0x130] sm:$0xf]
    %v159 = vld [vmem:[#allocation7 + $0x134] sm:$0xf]
    %v160 = vld [vmem:[#allocation7 + $0x138] sm:$0xf]
    %v161 = vld [vmem:[#allocation7 + $0x13c] sm:$0xf]
    %v162 = vld [vmem:[#allocation7 + $0x140] sm:$0xf]
    %v163 = vld [vmem:[#allocation7 + $0x144] sm:$0xf]
    %v164 = vld [vmem:[#allocation7 + $0x148] sm:$0xf]
    %v165 = vld [vmem:[#allocation7 + $0x14c] sm:$0xf]
    %v166 = vld [vmem:[#allocation7 + $0x150] sm:$0xf]
    %v167 = vld [vmem:[#allocation7 + $0x154] sm:$0xf]
    %v168 = vld [vmem:[#allocation7 + $0x158] sm:$0xf]
    %v169 = vld [vmem:[#allocation7 + $0x15c] sm:$0xf]
    %v170 = vld [vmem:[#allocation7 + $0x160] sm:$0xf]
    %v171 = vld [vmem:[#allocation7 + $0x164] sm:$0xf]
    %v172 = vld [vmem:[#allocation7 + $0x168] sm:$0xf]
    %v173 = vld [vmem:[#allocation7 + $0x16c] sm:$0xf]
    %v174 = vld [vmem:[#allocation7 + $0x170] sm:$0xf]
    %v175 = vld [vmem:[#allocation7 + $0x174] sm:$0xf]
    %v176 = vld [vmem:[#allocation7 + $0x178] sm:$0xf]
    %v177 = vld [vmem:[#allocation7 + $0x17c] sm:$0xf]
    %v178 = vld [vmem:[%s3] sm:$0x1]
    %v180 = vlaneseq
    %v181 = vshrl.u32 %v180, 7
    %v182 = vsub.s32 0, %v181
    %v183 = vrot.slane %v178, %v182
    %v197 = vunpack.c.l.b16 %v70
    %v198 = vunpack.c.l.b16 %v71
    %v199 = vunpack.c.l.b16 %v72
    %v200 = vunpack.c.l.b16 %v73
    %v201 = vunpack.c.l.b16 %v74
    %v202 = vunpack.c.l.b16 %v75
    %v203 = vunpack.c.l.b16 %v76
    %v204 = vunpack.c.l.b16 %v77
    %v205 = vunpack.c.l.b16 %v78
    %v206 = vunpack.c.l.b16 %v79
    %v207 = vunpack.c.l.b16 %v80
    %v208 = vunpack.c.l.b16 %v81
    %v209 = vrot.slane %v203, 7
    %vm210 = vcmask 1041409
    %v211 = vsel %vm210, %v209, %v197
    %v212 = vrot.slane %v204, 7
    %v213 = vsel %vm210, %v212, %v198
    %v214 = vrot.slane %v205, 7
    %v215 = vsel %vm210, %v214, %v199
    %v216 = vrot.slane %v206, 7
    %v217 = vsel %vm210, %v216, %v200
    %v218 = vrot.slane %v207, 7
    %v219 = vsel %vm210, %v218, %v201
    %v220 = vrot.slane %v208, 7
    %v221 = vsel %vm210, %v220, %v202
    %v222 = vpack.c.b16 %v211, %v211
    %v223 = vpack.c.b16 %v213, %v213
    %v224 = vpack.c.b16 %v215, %v215
    %v225 = vpack.c.b16 %v217, %v217
    %v226 = vpack.c.b16 %v219, %v219
    %v227 = vpack.c.b16 %v221, %v221
    %v330 = vunpack.c.l.b16 %v82
    %v331 = vunpack.c.l.b16 %v83
    %v332 = vunpack.c.l.b16 %v84
    %v333 = vunpack.c.l.b16 %v85
    %v334 = vunpack.c.l.b16 %v86
    %v335 = vunpack.c.l.b16 %v87
    %v336 = vunpack.c.l.b16 %v88
    %v337 = vunpack.c.l.b16 %v89
    %v338 = vunpack.c.l.b16 %v90
    %v339 = vunpack.c.l.b16 %v91
    %v340 = vunpack.c.l.b16 %v92
    %v341 = vunpack.c.l.b16 %v93
    %v342 = vunpack.c.l.b16 %v94
    %v343 = vunpack.c.l.b16 %v95
    %v344 = vunpack.c.l.b16 %v96
    %v345 = vunpack.c.l.b16 %v97
    %v346 = vunpack.c.l.b16 %v98
    %v347 = vunpack.c.l.b16 %v99
    %v348 = vunpack.c.l.b16 %v100
    %v349 = vunpack.c.l.b16 %v101
    %v350 = vunpack.c.l.b16 %v102
    %v351 = vunpack.c.l.b16 %v103
    %v352 = vunpack.c.l.b16 %v104
    %v353 = vunpack.c.l.b16 %v105
    %v354 = vunpack.c.l.b16 %v106
    %v355 = vunpack.c.l.b16 %v107
    %v356 = vunpack.c.l.b16 %v108
    %v357 = vunpack.c.l.b16 %v109
    %v358 = vunpack.c.l.b16 %v110
    %v359 = vunpack.c.l.b16 %v111
    %v360 = vunpack.c.l.b16 %v112
    %v361 = vunpack.c.l.b16 %v113
    %v362 = vunpack.c.l.b16 %v114
    %v363 = vunpack.c.l.b16 %v115
    %v364 = vunpack.c.l.b16 %v116
    %v365 = vunpack.c.l.b16 %v117
    %v366 = vunpack.c.l.b16 %v118
    %v367 = vunpack.c.l.b16 %v119
    %v368 = vunpack.c.l.b16 %v120
    %v369 = vunpack.c.l.b16 %v121
    %v370 = vunpack.c.l.b16 %v122
    %v371 = vunpack.c.l.b16 %v123
    %v372 = vunpack.c.l.b16 %v124
    %v373 = vunpack.c.l.b16 %v125
    %v374 = vunpack.c.l.b16 %v126
    %v375 = vunpack.c.l.b16 %v127
    %v376 = vunpack.c.l.b16 %v128
    %v377 = vunpack.c.l.b16 %v129
    %v378 = vunpack.c.l.b16 %v130
    %v379 = vunpack.c.l.b16 %v131
    %v380 = vunpack.c.l.b16 %v132
    %v381 = vunpack.c.l.b16 %v133
    %v382 = vunpack.c.l.b16 %v134
    %v383 = vunpack.c.l.b16 %v135
    %v384 = vunpack.c.l.b16 %v136
    %v385 = vunpack.c.l.b16 %v137
    %v386 = vunpack.c.l.b16 %v138
    %v387 = vunpack.c.l.b16 %v139
    %v388 = vunpack.c.l.b16 %v140
    %v389 = vunpack.c.l.b16 %v141
    %v390 = vunpack.c.l.b16 %v142
    %v391 = vunpack.c.l.b16 %v143
    %v392 = vunpack.c.l.b16 %v144
    %v393 = vunpack.c.l.b16 %v145
    %v394 = vunpack.c.l.b16 %v146
    %v395 = vunpack.c.l.b16 %v147
    %v396 = vunpack.c.l.b16 %v148
    %v397 = vunpack.c.l.b16 %v149
    %v398 = vunpack.c.l.b16 %v150
    %v399 = vunpack.c.l.b16 %v151
    %v400 = vunpack.c.l.b16 %v152
    %v401 = vunpack.c.l.b16 %v153
    %v402 = vunpack.c.l.b16 %v154
    %v403 = vunpack.c.l.b16 %v155
    %v404 = vunpack.c.l.b16 %v156
    %v405 = vunpack.c.l.b16 %v157
    %v406 = vunpack.c.l.b16 %v158
    %v407 = vunpack.c.l.b16 %v159
    %v408 = vunpack.c.l.b16 %v160
    %v409 = vunpack.c.l.b16 %v161
    %v410 = vunpack.c.l.b16 %v162
    %v411 = vunpack.c.l.b16 %v163
    %v412 = vunpack.c.l.b16 %v164
    %v413 = vunpack.c.l.b16 %v165
    %v414 = vunpack.c.l.b16 %v166
    %v415 = vunpack.c.l.b16 %v167
    %v416 = vunpack.c.l.b16 %v168
    %v417 = vunpack.c.l.b16 %v169
    %v418 = vunpack.c.l.b16 %v170
    %v419 = vunpack.c.l.b16 %v171
    %v420 = vunpack.c.l.b16 %v172
    %v421 = vunpack.c.l.b16 %v173
    %v422 = vunpack.c.l.b16 %v174
    %v423 = vunpack.c.l.b16 %v175
    %v424 = vunpack.c.l.b16 %v176
    %v425 = vunpack.c.l.b16 %v177
    %v426 = vpack.c.b16 %v331, %v330
    %v427 = vpack.c.b16 %v333, %v332
    %v428 = vpack.c.b16 %v335, %v334
    %v429 = vpack.c.b16 %v337, %v336
    %v430 = vpack.c.b16 %v339, %v338
    %v431 = vpack.c.b16 %v341, %v340
    %v432 = vpack.c.b16 %v343, %v342
    %v433 = vpack.c.b16 %v345, %v344
    %v434 = vpack.c.b16 %v347, %v346
    %v435 = vpack.c.b16 %v349, %v348
    %v436 = vpack.c.b16 %v351, %v350
    %v437 = vpack.c.b16 %v353, %v352
    %v438 = vpack.c.b16 %v355, %v354
    %v439 = vpack.c.b16 %v357, %v356
    %v440 = vpack.c.b16 %v359, %v358
    %v441 = vpack.c.b16 %v361, %v360
    %v442 = vpack.c.b16 %v363, %v362
    %v443 = vpack.c.b16 %v365, %v364
    %v444 = vpack.c.b16 %v367, %v366
    %v445 = vpack.c.b16 %v369, %v368
    %v446 = vpack.c.b16 %v371, %v370
    %v447 = vpack.c.b16 %v373, %v372
    %v448 = vpack.c.b16 %v375, %v374
    %v449 = vpack.c.b16 %v377, %v376
    %v450 = vpack.c.b16 %v379, %v378
    %v451 = vpack.c.b16 %v381, %v380
    %v452 = vpack.c.b16 %v383, %v382
    %v453 = vpack.c.b16 %v385, %v384
    %v454 = vpack.c.b16 %v387, %v386
    %v455 = vpack.c.b16 %v389, %v388
    %v456 = vpack.c.b16 %v391, %v390
    %v457 = vpack.c.b16 %v393, %v392
    %v458 = vpack.c.b16 %v395, %v394
    %v459 = vpack.c.b16 %v397, %v396
    %v460 = vpack.c.b16 %v399, %v398
    %v461 = vpack.c.b16 %v401, %v400
    %v462 = vpack.c.b16 %v403, %v402
    %v463 = vpack.c.b16 %v405, %v404
    %v464 = vpack.c.b16 %v407, %v406
    %v465 = vpack.c.b16 %v409, %v408
    %v466 = vpack.c.b16 %v411, %v410
    %v467 = vpack.c.b16 %v413, %v412
    %v468 = vpack.c.b16 %v415, %v414
    %v469 = vpack.c.b16 %v417, %v416
    %v470 = vpack.c.b16 %v419, %v418
    %v471 = vpack.c.b16 %v421, %v420
    %v472 = vpack.c.b16 %v423, %v422
    %v473 = vpack.c.b16 %v425, %v424
    %522 = vmatprep.subr.bf16.mxu0 0
    %523 = vmatpush1.bf16.msra.mxu0 %v433
    %524 = vmatprep.subr.bf16.mxu0 0
    %525 = vmatpush1.bf16.msra.mxu0 %v432
    %526 = vmatprep.subr.bf16.mxu0 0
    %527 = vmatpush1.bf16.msra.mxu0 %v431
    %528 = vmatprep.subr.bf16.mxu0 0
    %529 = vmatpush1.bf16.msra.mxu0 %v430
    %530 = vmatprep.subr.bf16.mxu0 0
    %531 = vmatpush1.bf16.msra.mxu0 %v429
    %532 = vmatprep.subr.bf16.mxu0 0
    %533 = vmatpush1.bf16.msra.mxu0 %v428
    %534 = vmatprep.subr.bf16.mxu0 0
    %535 = vmatpush1.bf16.msra.mxu0 %v427
    %536 = vmatprep.subr.bf16.mxu0 0
    %537 = vmatpush1.bf16.msra.mxu0 %v426
    %538 = vmatprep.subr.bf16.mxu0 0
    %539 = vmatpush2.bf16.msra.mxu0 %v441
    %540 = vmatprep.subr.bf16.mxu0 0
    %541 = vmatpush2.bf16.msra.mxu0 %v440
    %542 = vmatprep.subr.bf16.mxu0 0
    %543 = vmatpush2.bf16.msra.mxu0 %v439
    %544 = vmatprep.subr.bf16.mxu0 0
    %545 = vmatpush2.bf16.msra.mxu0 %v438
    %546 = vmatprep.subr.bf16.mxu0 0
    %547 = vmatpush2.bf16.msra.mxu0 %v437
    %548 = vmatprep.subr.bf16.mxu0 0
    %549 = vmatpush2.bf16.msra.mxu0 %v436
    %550 = vmatprep.subr.bf16.mxu0 0
    %551 = vmatpush2.bf16.msra.mxu0 %v435
    %552 = vmatprep.subr.bf16.mxu0 0
    %553 = vmatpush2.bf16.msra.mxu0 %v434
    %554 = vmatprep.mubr.bf16.mxu0 %v223
    %555 = vmatmul.mubr.bf16.gmra.mxu0 %v222
    %v556 = vpop.f32.mrf.mxu0
    %v557 = vadd.f32 %v183, %v556
    %v558 = vpop.f32.mrf.mxu0
    %v559 = vpop.f32.mrf.mxu0
    %v560 = vpop.f32.mrf.mxu0
    %561 = vdwg.mxu0
    %562 = vmatprep.subr.bf16.mxu0 0
    %563 = vmatpush1.bf16.msra.mxu0 %v449
    %564 = vmatprep.subr.bf16.mxu0 0
    %565 = vmatpush1.bf16.msra.mxu0 %v448
    %566 = vmatprep.subr.bf16.mxu0 0
    %567 = vmatpush1.bf16.msra.mxu0 %v447
    %568 = vmatprep.subr.bf16.mxu0 0
    %569 = vmatpush1.bf16.msra.mxu0 %v446
    %570 = vmatprep.subr.bf16.mxu0 0
    %571 = vmatpush1.bf16.msra.mxu0 %v445
    %572 = vmatprep.subr.bf16.mxu0 0
    %573 = vmatpush1.bf16.msra.mxu0 %v444
    %574 = vmatprep.subr.bf16.mxu0 0
    %575 = vmatpush1.bf16.msra.mxu0 %v443
    %576 = vmatprep.subr.bf16.mxu0 0
    %577 = vmatpush1.bf16.msra.mxu0 %v442
    %578 = vmatprep.subr.bf16.mxu0 0
    %579 = vmatpush2.bf16.msra.mxu0 %v457
    %580 = vmatprep.subr.bf16.mxu0 0
    %581 = vmatpush2.bf16.msra.mxu0 %v456
    %582 = vmatprep.subr.bf16.mxu0 0
    %583 = vmatpush2.bf16.msra.mxu0 %v455
    %584 = vmatprep.subr.bf16.mxu0 0
    %585 = vmatpush2.bf16.msra.mxu0 %v454
    %586 = vmatprep.subr.bf16.mxu0 0
    %587 = vmatpush2.bf16.msra.mxu0 %v453
    %588 = vmatprep.subr.bf16.mxu0 0
    %589 = vmatpush2.bf16.msra.mxu0 %v452
    %590 = vmatprep.subr.bf16.mxu0 0
    %591 = vmatpush2.bf16.msra.mxu0 %v451
    %592 = vmatprep.subr.bf16.mxu0 0
    %593 = vmatpush2.bf16.msra.mxu0 %v450
    %594 = vmatprep.mubr.bf16.mxu0 %v225
    %595 = vmatmul.mubr.bf16.gmra.mxu0 %v224
    %v596 = vpop.f32.mrf.mxu0
    %v597 = vadd.f32 %v557, %v596
    %v598 = vpop.f32.mrf.mxu0
    %v599 = vpop.f32.mrf.mxu0
    %v600 = vpop.f32.mrf.mxu0
    %601 = vdwg.mxu0
    %602 = vmatprep.subr.bf16.mxu0 0
    %603 = vmatpush1.bf16.msra.mxu0 %v465
    %604 = vmatprep.subr.bf16.mxu0 0
    %605 = vmatpush1.bf16.msra.mxu0 %v464
    %606 = vmatprep.subr.bf16.mxu0 0
    %607 = vmatpush1.bf16.msra.mxu0 %v463
    %608 = vmatprep.subr.bf16.mxu0 0
    %609 = vmatpush1.bf16.msra.mxu0 %v462
    %610 = vmatprep.subr.bf16.mxu0 0
    %611 = vmatpush1.bf16.msra.mxu0 %v461
    %612 = vmatprep.subr.bf16.mxu0 0
    %613 = vmatpush1.bf16.msra.mxu0 %v460
    %614 = vmatprep.subr.bf16.mxu0 0
    %615 = vmatpush1.bf16.msra.mxu0 %v459
    %616 = vmatprep.subr.bf16.mxu0 0
    %617 = vmatpush1.bf16.msra.mxu0 %v458
    %618 = vmatprep.subr.bf16.mxu0 0
    %619 = vmatpush2.bf16.msra.mxu0 %v473
    %620 = vmatprep.subr.bf16.mxu0 0
    %621 = vmatpush2.bf16.msra.mxu0 %v472
    %622 = vmatprep.subr.bf16.mxu0 0
    %623 = vmatpush2.bf16.msra.mxu0 %v471
    %624 = vmatprep.subr.bf16.mxu0 0
    %625 = vmatpush2.bf16.msra.mxu0 %v470
    %626 = vmatprep.subr.bf16.mxu0 0
    %627 = vmatpush2.bf16.msra.mxu0 %v469
    %628 = vmatprep.subr.bf16.mxu0 0
    %629 = vmatpush2.bf16.msra.mxu0 %v468
    %630 = vmatprep.subr.bf16.mxu0 0
    %631 = vmatpush2.bf16.msra.mxu0 %v467
    %632 = vmatprep.subr.bf16.mxu0 0
    %633 = vmatpush2.bf16.msra.mxu0 %v466
    %634 = vmatprep.mubr.bf16.mxu0 %v227
    %635 = vmatmul.mubr.bf16.gmra.mxu0 %v226
    %v636 = vpop.f32.mrf.mxu0
    %v637 = vadd.f32 %v597, %v636
    %v638 = vpop.f32.mrf.mxu0
    %v639 = vpop.f32.mrf.mxu0
    %v640 = vpop.f32.mrf.mxu0
    %641 = vdwg.mxu0
    %v642 = vld [vmem:[#allocation5] sm:$0x3]
    %vm643 = vcmp.lt.s32.totalorder %v642, 128
    %v644 = vsel %vm643, 1, 0
    %v645 = vmul.u32 %v642, %v644
    %v646 = vlaneseq
    %v647 = vand.u32 %v646, 127
    %v648 = vlaneseq
    %v649 = vshrl.u32 %v648, 7
    %v650 = vsub.s32 0, %v649
    %v651 = vrot.slane %v645, %v650
    %653 = vbcast.lane.b32.xlu0 %v651, 256
    %v654 = vpop.permute.xlu0 %653
    %v655 = vlaneseq
    %v656 = vshrl.u32 %v655, 7
    %v657 = vsub.s32 1, %v656
    %v658 = vrot.slane %v645, %v657
    %660 = vbcast.lane.b32.xlu0 %v658, 256
    %v661 = vpop.permute.xlu0 %660
    %vm662 = vcmp.eq.s32.totalorder %v654, %v647
    %vm663 = vcmp.eq.s32.totalorder %v661, %v647
    %v664 = vsel %vm662, 1, 0
    %v665 = vsel %vm663, 1, 0
    %v666 = vrot.slane %v664, 4
    %v667 = vadd.s32 %v664, %v666
    %v668 = vrot.slane %v667, 2
    %v669 = vadd.s32 %v667, %v668
    %v670 = vrot.slane %v669, 1
    %v671 = vadd.s32 %v669, %v670
    %v672 = vrot.slane %v665, 4
    %v673 = vadd.s32 %v665, %v672
    %v674 = vrot.slane %v673, 2
    %v675 = vadd.s32 %v673, %v674
    %v676 = vrot.slane %v675, 1
    %v677 = vadd.s32 %v675, %v676
    %vm678 = vcmp.gt.s32.totalorder %v671, 0
    %vm679 = vcmp.gt.s32.totalorder %v677, 0
    %v681 = vrot.slane %v637, 1
    %v684 = vsel %vm678, -1000000.0, %v637
    %v685 = vsel %vm679, -1000000.0, %v681
    %v688 = vrot.slane %v685, 7
    %v689 = vsel %vm210, %v688, %v684
    %691 = vst [vmem:[#allocation8] sm:$0x3] %v689
    // Predicated region
    $region30: #{tpu_custom_call.1} parent=1 // pred_check
      _
    $region31: #{tpu_custom_call.1} parent=1 // pred_check_branch
      %693 = sbr.rel (0) target = $region33
    $region32: #{tpu_custom_call.1} parent=1 // pred_region
      %s695 = ssub.s32 32, 32
      %696 = vsyncadd [#allocation4], %s695
      %s698 = sshll.u32 [#allocation8], 4
      %s699 = int_to_ptr.vmem [resolvable:$true] %s698
      %701 = dma.vmem_to_hbm [thread:$0]  %s699, 32, %s4, [#allocation4]
    $region33: #{tpu_custom_call.1} parent=1 // pred_fallthru
      _
    // Predicated region
    $region34: #{tpu_custom_call.1} parent=1 // pred_check
      _
    $region35: #{tpu_custom_call.1} parent=1 // pred_check_branch
      %703 = sbr.rel (0) target = $region37
    $region36: #{tpu_custom_call.1} parent=1 // pred_region
      %704 = dma.done [#allocation4], 32
    $region37: #{tpu_custom_call.1} parent=1 // pred_fallthru
      _
    %705 = vsyncpa [#allocation3], 1
    %706 = vsyncpa [#allocation6], 1
    %707 = vsyncpa [#allocation4], 1

</llo_original>
